<compile_context>
chip_gen: v6e
topology: v6e:2x2x1
jax: 0.10.0
libtpu: 0.0.40
codegen_flags: <defaults>
</compile_context>

<pallas_src>
import math
from functools import partial

import jax
import jax.numpy as jnp
from jax import lax
from jax.experimental import pallas as pl
from jax.experimental.pallas import tpu as pltpu


# ----------------------------------------------------------------------------
# Kernel 1 (run ONCE at setup): word prototypes = mapping_s(word_emb.T)
# ----------------------------------------------------------------------------
def _proto_kernel(wet_ref, mw_ref, mb_ref, proto_ref, proton_ref):
    p = jnp.dot(wet_ref[...], mw_ref[...],
                preferred_element_type=jnp.float32) + mb_ref[...]
    proto_ref[...] = p.astype(proto_ref.dtype)                    # (d_llm, W) raw
    # F.normalize(p=2, dim=-1) over d_llm (axis 0 of the (d_llm, W) layout).
    pn = p * lax.rsqrt(jnp.maximum(jnp.sum(p * p, axis=0, keepdims=True), 1e-24))
    proton_ref[...] = pn.astype(proton_ref.dtype)                 # bf16, for sims


def pallas_word_prototypes(word_emb, map_w, map_b):
    V, D = word_emb.shape
    W = map_w.shape[1]
    wet = word_emb.T
    protos_dw, protos_n = pl.pallas_call(
        _proto_kernel,
        out_shape=(jax.ShapeDtypeStruct((D, W), jnp.float32),
                   jax.ShapeDtypeStruct((D, W), jnp.bfloat16)),
        grid=(1,),
        in_specs=[
            pl.BlockSpec((D, V), lambda i: (0, 0)),
            pl.BlockSpec((V, W), lambda i: (0, 0)),
            pl.BlockSpec((1, W), lambda i: (0, 0)),
        ],
        out_specs=(pl.BlockSpec((D, W), lambda i: (0, 0)),
                   pl.BlockSpec((D, W), lambda i: (0, 0))),
    )(wet, map_w, map_b.reshape(1, -1))
    return protos_dw.T, protos_n           # (W, d_llm) for gather, (d_llm, W) normed


# ----------------------------------------------------------------------------
# Kernel 2: fused STEmbedding + rec/input projections + length predictor +
#           prefix cosine similarities (single launch, intermediates in VMEM)
# ----------------------------------------------------------------------------
def _frontend_kernel(x_ref, emb_ref, pw_ref, pb_ref, cw_ref, cb_ref,
                     w1_ref, b1_ref, w2_ref, b2_ref, protn_ref,
                     comb_ref, sims_ref, logit_ref, *, n_nodes, batch, d_llm):
    # Patch embedding + node/hod/dow embeddings.
    xe = jnp.dot(x_ref[...].astype(jnp.bfloat16), pw_ref[...],
                 preferred_element_type=jnp.float32) + pb_ref[...] + emb_ref[...]
    # Fused [input_projection | rec_projection | pad] -> lane-dense 128-wide store.
    comb = jnp.dot(xe.astype(jnp.bfloat16), cw_ref[...],
                   preferred_element_type=jnp.float32) + cb_ref[...]
    comb_ref[...] = comb.astype(comb_ref.dtype)

    ie = comb[:, :d_llm]                                     # (B*N, d_llm), lane 0
    # Cosine similarities against precomputed normalized prototypes.
    ien = ie * lax.rsqrt(jnp.maximum(jnp.sum(ie * ie, axis=-1, keepdims=True), 1e-24))
    sims_ref[...] = jnp.dot(ien.astype(jnp.bfloat16), protn_ref[...],
                            preferred_element_type=jnp.float32).astype(sims_ref.dtype)

    # Length predictor: (B, N*d_llm) @ W1 done as per-row contributions with
    # simple aligned slices (tiny ancillary compute, layout-friendly ops only).
    rows = []
    for b in range(batch):
        acc = b1_ref[...]                                    # (1, 128) f32
        for n in range(n_nodes):
            r = b * n_nodes + n
            acc = acc + jnp.dot(ie[r:r + 1, :].astype(jnp.bfloat16), w1_ref[n],
                                preferred_element_type=jnp.float32)
        rows.append(acc)
    h1 = jnp.maximum(jnp.concatenate(rows, axis=0), 0.0)     # ReLU
    logit_ref[...] = (jnp.dot(h1.astype(jnp.bfloat16), w2_ref[...],
                              preferred_element_type=jnp.float32)
                      + b2_ref[...]).astype(logit_ref.dtype)


def pallas_frontend(x_flat, emb, params, protos_n, batch, n_nodes, d_llm):
    M = x_flat.shape[0]
    W = protos_n.shape[1]
    P = params["lp_w2"].shape[1]

    def full(arr):
        nd = arr.ndim
        return pl.BlockSpec(arr.shape, lambda i, _n=nd: (0,) * _n)

    args = (x_flat, emb, params["patch_w"], params["patch_b"],
            params["comb_w"], params["comb_b"],
            params["lp_w1"], params["lp_b1"], params["lp_w2"], params["lp_b2"],
            protos_n)
    kern = partial(_frontend_kernel, n_nodes=n_nodes, batch=batch, d_llm=d_llm)
    return pl.pallas_call(
        kern,
        out_shape=(jax.ShapeDtypeStruct((M, 128), jnp.float32),
                   jax.ShapeDtypeStruct((M, W), jnp.float32),
                   jax.ShapeDtypeStruct((batch, P), jnp.float32)),
        grid=(1,),
        in_specs=[full(a) for a in args],
        out_specs=(pl.BlockSpec((M, 128), lambda i: (0, 0)),
                   pl.BlockSpec((M, W), lambda i: (0, 0)),
                   pl.BlockSpec((batch, P), lambda i: (0, 0))),
    )(*args)


# ----------------------------------------------------------------------------
# Kernel 3: GPT2-style backbone, batch folded into rows, layers streamed
# ----------------------------------------------------------------------------
def _backbone_kernel(maskb_ref, x_ref, wpe_ref,
                     ln1g_ref, ln1b_ref, attnw_ref, attnb_ref,
                     projw_ref, projb_ref, ln2g_ref, ln2b_ref,
                     fcw_ref, fcb_ref, mprojw_ref, mprojb_ref,
                     lnfg_ref, lnfb_ref, outw_ref, outb_ref,
                     pred_ref, h_ref, *, n_head, scale):
    layer = pl.program_id(1)
    R, D = h_ref.shape
    Dh = D // n_head

    def ln(v, g, b, eps=1e-5):
        mu = jnp.mean(v, axis=-1, keepdims=True)
        var = jnp.mean((v - mu) ** 2, axis=-1, keepdims=True)
        return (v - mu) * lax.rsqrt(var + eps) * g + b

    @pl.when(layer == 0)
    def _():                                               # init hidden-state carry
        h_ref[...] = x_ref[...] + wpe_ref[...]

    h = h_ref[...]
    bias = maskb_ref[...]                                  # (R, R) additive mask

    # ---- attention: head outputs accumulated through proj_w slices (no concat) ----
    a = ln(h, ln1g_ref[...], ln1b_ref[...]).astype(jnp.bfloat16)
    qkv = jnp.dot(a, attnw_ref[...], preferred_element_type=jnp.float32) + attnb_ref[...]
    pw = projw_ref[...]                                    # (D, D) bf16
    attn_proj = jnp.zeros((R, D), jnp.float32)
    for hh in range(n_head):
        q = qkv[:, hh * Dh:(hh + 1) * Dh].astype(jnp.bfloat16)
        k = qkv[:, D + hh * Dh:D + (hh + 1) * Dh].astype(jnp.bfloat16)
        v = qkv[:, 2 * D + hh * Dh:2 * D + (hh + 1) * Dh].astype(jnp.bfloat16)
        s = lax.dot_general(q, k, (((1,), (1,)), ((), ())),
                            preferred_element_type=jnp.float32) * scale + bias
        s = s - jnp.max(s, axis=-1, keepdims=True)
        p = jnp.exp(s)
        p = p * pl.reciprocal(jnp.sum(p, axis=-1, keepdims=True), approx=True)
        o_h = jnp.dot(p.astype(jnp.bfloat16), v, preferred_element_type=jnp.float32)
        attn_proj = attn_proj + jnp.dot(
            o_h.astype(jnp.bfloat16), pw[hh * Dh:(hh + 1) * Dh, :],
            preferred_element_type=jnp.float32)
    h = h + attn_proj + projb_ref[...]

    # ---- MLP ----
    a = ln(h, ln2g_ref[...], ln2b_ref[...]).astype(jnp.bfloat16)
    m = jnp.dot(a, fcw_ref[...], preferred_element_type=jnp.float32) + fcb_ref[...]
    m = jax.nn.gelu(m, approximate=True).astype(jnp.bfloat16)
    h = h + jnp.dot(m, mprojw_ref[...], preferred_element_type=jnp.float32) + mprojb_ref[...]
    h_ref[...] = h

    # ---- final LayerNorm + lane-dense (128-wide) output projection, all rows ----
    @pl.when(layer == pl.num_programs(1) - 1)
    def _():
        hn = ln(h_ref[...], lnfg_ref[...], lnfb_ref[...]).astype(jnp.bfloat16)
        pred = jnp.dot(hn, outw_ref[...],
                       preferred_element_type=jnp.float32) + outb_ref[...]
        pred_ref[...] = pred.astype(pred_ref.dtype)


def pallas_backbone(llm, cfg, x, attn_mask, out_w_pad, out_b_pad):
    B, Lf, D = x.shape
    nl, H = cfg["llm_layers"], cfg["n_head"]
    scale = 1.0 / math.sqrt(D // H)

    # Fold the batch into the matmul M-dim.  B >= 4: keep a 2-way "parallel" group
    # axis (one sample-group per v7x TensorCore).  Tiny B: one group = full fold.
    groups = 2 if (B % 2 == 0 and B >= 4) else 1
    sg = B // groups
    R = sg * Lf

    # Per-sample block-diagonal causal + key-padding additive bias, built in XLA
    # so the kernel needs no integer div/mod.
    causal = jnp.tril(jnp.ones((Lf, Lf), jnp.float32))
    allowed = causal[None, :, :] * attn_mask[:, None, :]
    bias = jnp.where(allowed > 0, 0.0, -1e9).astype(jnp.float32)      # (B, Lf, Lf)
    bias_r = bias.reshape(groups, sg, Lf, Lf)
    bias_g = jnp.full((groups, R, R), -1e9, jnp.float32)
    for s in range(sg):
        bias_g = bias_g.at[:, s * Lf:(s + 1) * Lf, s * Lf:(s + 1) * Lf].set(bias_r[:, s])

    x_g = x.reshape(groups, R, D).astype(jnp.float32)
    wpe_g = jnp.tile(llm["wpe"][:Lf], (sg, 1))                         # (R, D)

    def const(arr):
        # Constant across the whole grid (Pallas skips re-DMA when the block index
        # doesn't change).  At real backbone dims these would additionally be
        # single-buffered to halve their VMEM footprint.
        nd = arr.ndim
        return pl.BlockSpec(arr.shape, lambda g, l, _n=nd: (0,) * _n)

    def per_layer(shape):
        # Stacked (nl, a, b) weights: one layer streamed per "arbitrary" grid step.
        return pl.BlockSpec((None,) + shape, lambda g, l: (l, 0, 0))

    kern = partial(_backbone_kernel, n_head=H, scale=scale)

    flops = int(groups * (nl * (24 * R * D * D + 4 * R * R * D) + 2 * R * D * 128))
    transcendentals = int(groups * nl * (H * R * R + 4 * R * D))
    bytes_accessed = int(4 * groups * (R * R + 2 * R * D + R * 128)
                         + 2 * groups * nl * 12 * D * D
                         + 4 * nl * 9 * D + 2 * D * 128 + 4 * (2 * D + 128))

    return pl.pallas_call(
        kern,
        out_shape=jax.ShapeDtypeStruct((groups, R, 128), jnp.float32),
        grid=(groups, nl),
        in_specs=[
            pl.BlockSpec((None, R, R), lambda g, l: (g, 0, 0)),        # mask bias
            pl.BlockSpec((None, R, D), lambda g, l: (g, 0, 0)),        # inputs_embeds
            const(wpe_g),
            per_layer((1, D)), per_layer((1, D)),                      # ln1 g/b
            per_layer((D, 3 * D)), per_layer((1, 3 * D)),              # attn qkv w/b
            per_layer((D, D)), per_layer((1, D)),                      # attn proj w/b
            per_layer((1, D)), per_layer((1, D)),                      # ln2 g/b
            per_layer((D, 4 * D)), per_layer((1, 4 * D)),              # mlp fc w/b
            per_layer((4 * D, D)), per_layer((1, D)),                  # mlp proj w/b
            const(llm["lnf_g"]), const(llm["lnf_b"]),                  # ln_f g/b
            const(out_w_pad), const(out_b_pad),                        # output proj
        ],
        out_specs=pl.BlockSpec((None, R, 128), lambda g, l: (g, 0, 0)),
        scratch_shapes=[pltpu.VMEM((R, D), jnp.float32)],              # hidden carry
        compiler_params=pltpu.CompilerParams(
            dimension_semantics=("parallel", "arbitrary"),
            vmem_limit_bytes=32 * 1024 * 1024),
        cost_estimate=pl.CostEstimate(flops=flops, transcendentals=transcendentals,
                                      bytes_accessed=bytes_accessed),
    )(bias_g, x_g, wpe_g,
      llm["ln1_g"], llm["ln1_b"], llm["attn_w"], llm["attn_b"],
      llm["proj_w"], llm["proj_b"], llm["ln2_g"], llm["ln2_b"],
      llm["fc_w"], llm["fc_b"], llm["mproj_w"], llm["mproj_b"],
      llm["lnf_g"], llm["lnf_b"], out_w_pad, out_b_pad)


# ----------------------------------------------------------------------------
# Forward pass (fully jit-able — no host sync, no dynamic shapes)
# ----------------------------------------------------------------------------
def air_ours_forward(params, cfg, history_data, word_protos, protos_n):
    B, T, N, C = history_data.shape
    c_in, d_model, d_llm = cfg["c_in"], cfg["d_model"], cfg["d_llm"]
    num_s = cfg["num_pre_s"]
    assert T == cfg["seq_len"]

    # ---- fused STEmbedding + projections + length predictor + cosine sims ----
    xc = history_data[..., :c_in]
    x_flat = jnp.transpose(xc, (0, 2, 3, 1)).reshape(B * N, c_in * T)
    hod_idx = history_data[:, -1, :, c_in].astype(jnp.int32)
    dow_idx = history_data[:, -1, :, c_in + 1].astype(jnp.int32)
    emb = (params["node_emb"][None] + params["hod_emb"][hod_idx]
           + params["dow_emb"][dow_idx]).reshape(B * N, d_model)

    comb, sims_flat, length_logits = pallas_frontend(
        x_flat, emb, params, protos_n, B, N, d_llm)

    inputs_embeds = comb[:, :d_llm].reshape(B, N, d_llm)
    rec = comb[:, d_llm:d_llm + T].reshape(B, N, T)
    rec_x = jnp.transpose(rec, (0, 2, 1))[..., None]                   # [B,T,N,1]

    # ---- prefix alignment (batched, static top_k + length masking) ----
    optimal_length = jnp.argmax(length_logits, axis=-1) + 1            # [B]
    sims = sims_flat.reshape(B, N, -1)
    top_vals, top_idx = lax.top_k(sims, num_s)                         # [B,N,num_s]
    klt = (lax.broadcasted_iota(jnp.int32, (B, num_s), 1)
           < optimal_length[:, None]).astype(jnp.float32)
    inv_len = 1.0 / optimal_length.astype(jnp.float32)
    per_sample_loss = -jnp.sum(
        jnp.sum(top_vals * klt[:, None, :], axis=-1) * inv_len[:, None], axis=-1)
    # Reference overwrites alignment_loss every iteration -> only last sample kept.
    alignment_loss = per_sample_loss[B - 1]

    gathered = word_protos[top_idx]                                    # [B,N,num_s,d]
    prefix_prompts = jnp.mean(gathered, axis=1) * klt[:, :, None]      # pad rows -> 0
    attention_mask = jnp.concatenate([klt, jnp.ones((B, N), jnp.float32)], axis=1)
    inputs_full = jnp.concatenate([prefix_prompts, inputs_embeds], axis=1)

    # ---- backbone + lane-dense output projection ----
    pred_full = pallas_backbone(params["llm"], cfg, inputs_full, attention_mask,
                                params["out_w_pad"], params["out_b_pad"])
    Lf = num_s + N
    pred = pred_full.reshape(B, Lf, 128)[:, num_s:, :T]                # [B,N,T]
    outputs = jnp.transpose(pred, (0, 2, 1))[..., None]                # [B,T,N,1]
    return {"pred": outputs, "rec": rec_x, "align": alignment_loss}


# ----------------------------------------------------------------------------
# Deterministic synthetic parameters (no checkpoint loading)
# ----------------------------------------------------------------------------
def init_params(key, cfg):
    T, d_model, d_llm = cfg["seq_len"], cfg["d_model"], cfg["d_llm"]
    N, c_in = cfg["num_nodes"], cfg["c_in"]
    nl, P = cfg["llm_layers"], cfg["num_pre_s"]
    keys = iter(jax.random.split(key, 64))
    bf = jnp.bfloat16

    def nrm(shape, s=0.02, dtype=jnp.float32):
        return (s * jax.random.normal(next(keys), shape)).astype(dtype)

    zeros = lambda *shape: jnp.zeros(shape, jnp.float32)
    ones = lambda *shape: jnp.ones(shape, jnp.float32)

    # Fused rec/input 1x1-conv projections, lane-dense 128-wide:
    #   columns [0:d_llm) = input projection, [d_llm:d_llm+T) = rec projection.
    inp_w, rec_w = nrm((d_model, d_llm)), nrm((d_model, T))
    comb_w = jnp.zeros((d_model, 128), jnp.float32)
    comb_w = comb_w.at[:, :d_llm].set(inp_w).at[:, d_llm:d_llm + T].set(rec_w)

    out_w = nrm((d_llm, T))
    out_w_pad = jnp.zeros((d_llm, 128), jnp.float32).at[:, :T].set(out_w).astype(bf)

    params = dict(
        patch_w=nrm((c_in * T, d_model), dtype=bf), patch_b=zeros(1, d_model),
        node_emb=nrm((N, d_model), 0.1),
        hod_emb=nrm((cfg["hod_time"], d_model), 0.1),
        dow_emb=nrm((7, d_model), 0.1),
        comb_w=comb_w.astype(bf), comb_b=zeros(1, 128),
        out_w_pad=out_w_pad, out_b_pad=zeros(1, 128),
        word_emb=nrm((cfg["vocab"], d_llm), 0.1),
        map_s_w=nrm((cfg["vocab"], cfg["word_size"])), map_s_b=zeros(cfg["word_size"]),
        lp_w1=nrm((N, d_llm, 128), dtype=bf), lp_b1=zeros(1, 128),
        lp_w2=nrm((128, P), dtype=bf), lp_b2=zeros(1, P),
    )
    # Per-layer GPT2-style weights: stacked along a leading layer axis (streamed by
    # the kernel's layer grid axis).  Vectors stored (nl, 1, X) -> 2-D when indexed.
    llm = dict(
        wpe=nrm((cfg["max_pos"], d_llm)),
        lnf_g=ones(1, d_llm), lnf_b=zeros(1, d_llm),
        ln1_g=ones(nl, 1, d_llm), ln1_b=zeros(nl, 1, d_llm),
        attn_w=nrm((nl, d_llm, 3 * d_llm), dtype=bf), attn_b=zeros(nl, 1, 3 * d_llm),
        proj_w=nrm((nl, d_llm, d_llm), dtype=bf), proj_b=zeros(nl, 1, d_llm),
        ln2_g=ones(nl, 1, d_llm), ln2_b=zeros(nl, 1, d_llm),
        fc_w=nrm((nl, d_llm, 4 * d_llm), dtype=bf), fc_b=zeros(nl, 1, 4 * d_llm),
        mproj_w=nrm((nl, 4 * d_llm, d_llm), dtype=bf), mproj_b=zeros(nl, 1, d_llm),
    )
    params["llm"] = llm
    return params


# ----------------------------------------------------------------------------
# Main
# ----------------------------------------------------------------------------
if __name__ == "__main__":
    cfg = dict(
        seq_len=8, pred_len=8, d_model=32, num_nodes=8,
        d_llm=64, n_head=4, llm_layers=2, max_pos=32,
        num_pre_s=4, word_size=16, vocab=50,
        c_in=1, hod_time=24,              # 'AIR' data -> 24 hours-of-day
    )

    key = jax.random.PRNGKey(0)
    k_param, k_val, k_hod, k_dow = jax.random.split(key, 4)
    params = init_params(k_param, cfg)

    B, T, N = 2, cfg["seq_len"], cfg["num_nodes"]
    vals = jax.random.normal(k_val, (B, T, N, 1), jnp.float32)
    hod = jax.random.randint(k_hod, (B, T, N, 1), 0, cfg["hod_time"]).astype(jnp.float32)
    dow = jax.random.randint(k_dow, (B, T, N, 1), 0, 7).astype(jnp.float32)
    history_data = jnp.concatenate([vals, hod, dow], axis=-1)          # [B, T, N, 3]

    # Word prototypes are input-independent -> computed once, outside the forward.
    word_protos, protos_n = pallas_word_prototypes(
        params["word_emb"], params["map_s_w"], params["map_s_b"])

    fwd = jax.jit(lambda p, x, wp, pn: air_ours_forward(p, cfg, x, wp, pn))
    result = fwd(params, history_data, word_protos, protos_n)
    jax.block_until_ready((result["pred"], result["rec"], result["align"]))

    assert result["pred"].shape == (B, T, N, 1)
    assert result["rec"].shape == (B, T, N, 1)
    assert result["align"].shape == ()
    print("KERNEL_OK")
</pallas_src>

<mosaic_0001>
module attributes {stable_mosaic.version = 11 : i64} {
  func.func @_proto_kernel(%arg0: i32, %arg1: memref<64x50xf32, #tpu.memory_space<vmem>>, %arg2: memref<50x16xf32, #tpu.memory_space<vmem>>, %arg3: memref<1x16xf32, #tpu.memory_space<vmem>>, %arg4: memref<64x16xf32, #tpu.memory_space<vmem>>, %arg5: memref<64x16xbf16, #tpu.memory_space<vmem>>) attributes {dimension_semantics = [#tpu.dimension_semantics<arbitrary>], iteration_bounds = array<i64: 1>, scalar_prefetch = 0 : i64, scratch_operands = 0 : i64, tpu.core_type = #tpu.core_type<tc>, window_params = [{pipeline_mode = #tpu.pipeline_mode<synchronous>, transform_indices = @transform_0, window_bounds = array<i64: 64, 50>}, {pipeline_mode = #tpu.pipeline_mode<synchronous>, transform_indices = @transform_1, window_bounds = array<i64: 50, 16>}, {pipeline_mode = #tpu.pipeline_mode<synchronous>, transform_indices = @transform_2, window_bounds = array<i64: 1, 16>}, {pipeline_mode = #tpu.pipeline_mode<synchronous>, transform_indices = @transform_3, window_bounds = array<i64: 64, 16>}, {pipeline_mode = #tpu.pipeline_mode<synchronous>, transform_indices = @transform_4, window_bounds = array<i64: 64, 16>}]} {
    %c0 = arith.constant 0 : index
    %c0_0 = arith.constant 0 : index
    %0 = vector.load %arg1[%c0, %c0_0] : memref<64x50xf32, #tpu.memory_space<vmem>>, vector<64x50xf32>
    %c0_1 = arith.constant 0 : index
    %c0_2 = arith.constant 0 : index
    %1 = vector.load %arg2[%c0_1, %c0_2] : memref<50x16xf32, #tpu.memory_space<vmem>>, vector<50x16xf32>
    %cst = arith.constant dense<0.000000e+00> : vector<64x16xf32>
    %2 = tpu.matmul %0, %1, %cst {dimension_numbers = #tpu.dot_dimension_numbers<[1], [0], [0], [1], [0, 0, 1, 1], [], []>} : vector<64x50xf32>, vector<50x16xf32>, vector<64x16xf32> -> vector<64x16xf32>
    %c0_3 = arith.constant 0 : index
    %c0_4 = arith.constant 0 : index
    %3 = vector.load %arg3[%c0_3, %c0_4] : memref<1x16xf32, #tpu.memory_space<vmem>>, vector<1x16xf32>
    %4 = vector.broadcast %3 : vector<1x16xf32> to vector<64x16xf32>
    %5 = arith.addf %2, %4 : vector<64x16xf32>
    %c0_5 = arith.constant 0 : index
    %c0_6 = arith.constant 0 : index
    %6 = vector.load %arg4[%c0_5, %c0_6] : memref<64x16xf32, #tpu.memory_space<vmem>>, vector<64x16xf32>
    tpu.vector_store %arg4[%c0_5, %c0_6], %5 {strides = array<i32>} : memref<64x16xf32, #tpu.memory_space<vmem>>, vector<64x16xf32>,
    %7 = arith.mulf %5, %5 : vector<64x16xf32>
    %cst_7 = arith.constant dense<0.000000e+00> : vector<16xf32>
    %8 = vector.multi_reduction <add>, %7, %cst_7 [0] : vector<64x16xf32> to vector<16xf32>
    %9 = vector.shape_cast %8 : vector<16xf32> to vector<1x16xf32>
    %cst_8 = arith.constant 1.000000e-24 : f32
    %10 = vector.broadcast %cst_8 : f32 to vector<1x16xf32>
    %11 = arith.maximumf %9, %10 : vector<1x16xf32>
    %12 = math.rsqrt %11 : vector<1x16xf32>
    %13 = vector.broadcast %12 : vector<1x16xf32> to vector<64x16xf32>
    %14 = arith.mulf %5, %13 : vector<64x16xf32>
    %15 = arith.truncf %14 : vector<64x16xf32> to vector<64x16xbf16>
    %c0_9 = arith.constant 0 : index
    %c0_10 = arith.constant 0 : index
    %16 = vector.load %arg5[%c0_9, %c0_10] : memref<64x16xbf16, #tpu.memory_space<vmem>>, vector<64x16xbf16>
    tpu.vector_store %arg5[%c0_9, %c0_10], %15 {strides = array<i32>} : memref<64x16xbf16, #tpu.memory_space<vmem>>, vector<64x16xbf16>,
    return
  }
  func.func @transform_0(%arg0: i32) -> (i32, i32) {
    %c0_i32 = arith.constant 0 : i32
    %c0_i32_0 = arith.constant 0 : i32
    %c0_i32_1 = arith.constant 0 : i32
    return %c0_i32, %c0_i32_0 : i32, i32
  }
  func.func @transform_1(%arg0: i32) -> (i32, i32) {
    %c0_i32 = arith.constant 0 : i32
    %c0_i32_0 = arith.constant 0 : i32
    %c0_i32_1 = arith.constant 0 : i32
    return %c0_i32, %c0_i32_0 : i32, i32
  }
  func.func @transform_2(%arg0: i32) -> (i32, i32) {
    %c0_i32 = arith.constant 0 : i32
    %c0_i32_0 = arith.constant 0 : i32
    %c0_i32_1 = arith.constant 0 : i32
    return %c0_i32, %c0_i32_0 : i32, i32
  }
  func.func @transform_3(%arg0: i32) -> (i32, i32) {
    %c0_i32 = arith.constant 0 : i32
    %c0_i32_0 = arith.constant 0 : i32
    %c0_i32_1 = arith.constant 0 : i32
    return %c0_i32, %c0_i32_0 : i32, i32
  }
  func.func @transform_4(%arg0: i32) -> (i32, i32) {
    %c0_i32 = arith.constant 0 : i32
    %c0_i32_0 = arith.constant 0 : i32
    %c0_i32_1 = arith.constant 0 : i32
    return %c0_i32, %c0_i32_0 : i32, i32
  }
}

</mosaic_0001>

<llo_original>
// kernel: tpu_custom_call.1
$region0: #{tpu_custom_call.1}
  #allocation0 [shape = 'u32[]', space=smem, size = 0x4, offset = 0x4, fixed_abs, tag = 'smem constant byte address 0x4 - core index']
  #allocation1 [shape = 'u32[144,128]{1,0:T(1,128)}', space=vmem, size = 0x12000, scoped, tag = 'internal scratch']
  %s0 = inlined_call_operand.vmem [shape: f32[64,50], index: 0, kind: input, shape index: {}]
  %s1 = inlined_call_operand.vmem [shape: f32[50,16], index: 1, kind: input, shape index: {}]
  %s2 = inlined_call_operand.vmem [shape: f32[1,16], index: 2, kind: input, shape index: {}]
  %s3 = inlined_call_operand.vmem [shape: f32[64,16], index: 3, kind: output, shape index: {0}]
  %s4 = inlined_call_operand.vmem [shape: bf16[64,16], index: 4, kind: output, shape index: {1}]
  %5 = xla_tuple %s3, %s4
  %s6 = sld [smem:[#allocation0]]
  $region30: #{tpu_custom_call.1} parent=0
    _
  %s8 = ssub.s32 1, %s6
  %s9 = scalar_select 0, %s8, %s6
  // Predicated region
  $region2: #{tpu_custom_call.1} parent=0 // pred_check
    _
  $region3: #{tpu_custom_call.1} parent=0 // pred_check_branch
    %11 = sbr.rel (0) target = $region5
  $region4: #{tpu_custom_call.1} parent=0 // pred_region
    _
  $region5: #{tpu_custom_call.1} parent=0 // pred_fallthru
    _
  // Predicated region
  $region6: #{tpu_custom_call.1} parent=0 // pred_check
    _
  $region7: #{tpu_custom_call.1} parent=0 // pred_check_branch
    %13 = sbr.rel (0) target = $region9
  $region8: #{tpu_custom_call.1} parent=0 // pred_region
    _
  $region9: #{tpu_custom_call.1} parent=0 // pred_fallthru
    _
  // Predicated region
  $region10: #{tpu_custom_call.1} parent=0 // pred_check
    _
  $region11: #{tpu_custom_call.1} parent=0 // pred_check_branch
    %15 = sbr.rel (0) target = $region13
  $region12: #{tpu_custom_call.1} parent=0 // pred_region
    _
  $region13: #{tpu_custom_call.1} parent=0 // pred_fallthru
    _
  %v16 = vld [vmem:[%s0] sm:$0xff]
  %v17 = vld [vmem:[%s0 + $0x8] sm:$0xff]
  %v18 = vld [vmem:[%s0 + $0x10] sm:$0xff]
  %v19 = vld [vmem:[%s0 + $0x18] sm:$0xff]
  %v20 = vld [vmem:[%s0 + $0x20] sm:$0xff]
  %v21 = vld [vmem:[%s0 + $0x28] sm:$0xff]
  %v22 = vld [vmem:[%s0 + $0x30] sm:$0xff]
  %v23 = vld [vmem:[%s0 + $0x38] sm:$0xff]
  %v24 = vld [vmem:[%s1] sm:$0xff]
  %v25 = vld [vmem:[%s1 + $0x8] sm:$0xff]
  %v26 = vld [vmem:[%s1 + $0x10] sm:$0xff]
  %v27 = vld [vmem:[%s1 + $0x18] sm:$0xff]
  %v28 = vld [vmem:[%s1 + $0x20] sm:$0xff]
  %v29 = vld [vmem:[%s1 + $0x28] sm:$0xff]
  %v30 = vld [vmem:[%s1 + $0x30] sm:$0x3]
  %v31 = vld [vmem:[%s2] sm:$0x1]
  %v33 = vlaneseq
  %v34 = vshrl.u32 %v33, 7
  %v35 = vsub.s32 0, %v34
  %v36 = vrot.slane %v31, %v35
  %vm38 = vcmask 408576
  %v40 = vsel %vm38, %v16, 0
  %v43 = vsel %vm38, %v17, 0
  %v46 = vsel %vm38, %v18, 0
  %v49 = vsel %vm38, %v19, 0
  %v52 = vsel %vm38, %v20, 0
  %v55 = vsel %vm38, %v21, 0
  %v58 = vsel %vm38, %v22, 0
  %v61 = vsel %vm38, %v23, 0
  %vm63 = vcmask 1041408
  %v65 = vsel %vm63, %v30, 0
  %67 = vmatprep.subr.mxu0 0.0
  %68 = vmatpush1.msra.mxu0 0.0
  %69 = vmatprep.subr.mxu0 0.0
  %70 = vmatpush1.msra.mxu0 0.0
  %71 = vmatprep.subr.mxu0 0.0
  %72 = vmatpush1.msra.mxu0 0.0
  %73 = vmatprep.subr.mxu0 0.0
  %74 = vmatpush1.msra.mxu0 0.0
  %75 = vmatprep.subr.mxu0 0.0
  %76 = vmatpush1.msra.mxu0 0.0
  %77 = vmatprep.subr.mxu0 0.0
  %78 = vmatpush1.msra.mxu0 0.0
  %79 = vmatprep.subr.mxu0 0.0
  %80 = vmatpush1.msra.mxu0 0.0
  %81 = vmatprep.subr.mxu0 0.0
  %82 = vmatpush1.msra.mxu0 0.0
  %83 = vmatprep.subr.mxu0 0.0
  %84 = vmatpush1.msra.mxu0 0.0
  %85 = vmatprep.subr.mxu0 0.0
  %86 = vmatpush1.msra.mxu0 %v65
  %87 = vmatprep.subr.mxu0 0.0
  %88 = vmatpush1.msra.mxu0 %v29
  %89 = vmatprep.subr.mxu0 0.0
  %90 = vmatpush1.msra.mxu0 %v28
  %91 = vmatprep.subr.mxu0 0.0
  %92 = vmatpush1.msra.mxu0 %v27
  %93 = vmatprep.subr.mxu0 0.0
  %94 = vmatpush1.msra.mxu0 %v26
  %95 = vmatprep.subr.mxu0 0.0
  %96 = vmatpush1.msra.mxu0 %v25
  %97 = vmatprep.subr.mxu0 0.0
  %98 = vmatpush1.msra.mxu0 %v24
  %99 = vmatprep.subr.mxu0 0.0
  %100 = vmatpush2.msra.mxu0 0.0
  %101 = vmatprep.subr.mxu0 0.0
  %102 = vmatpush2.msra.mxu0 0.0
  %103 = vmatprep.subr.mxu0 0.0
  %104 = vmatpush2.msra.mxu0 0.0
  %105 = vmatprep.subr.mxu0 0.0
  %106 = vmatpush2.msra.mxu0 0.0
  %107 = vmatprep.subr.mxu0 0.0
  %108 = vmatpush2.msra.mxu0 0.0
  %109 = vmatprep.subr.mxu0 0.0
  %110 = vmatpush2.msra.mxu0 0.0
  %111 = vmatprep.subr.mxu0 0.0
  %112 = vmatpush2.msra.mxu0 0.0
  %113 = vmatprep.subr.mxu0 0.0
  %114 = vmatpush2.msra.mxu0 0.0
  %115 = vmatprep.subr.mxu0 0.0
  %116 = vmatpush2.msra.mxu0 0.0
  %117 = vmatprep.subr.mxu0 0.0
  %118 = vmatpush2.msra.mxu0 0.0
  %119 = vmatprep.subr.mxu0 0.0
  %120 = vmatpush2.msra.mxu0 0.0
  %121 = vmatprep.subr.mxu0 0.0
  %122 = vmatpush2.msra.mxu0 0.0
  %123 = vmatprep.subr.mxu0 0.0
  %124 = vmatpush2.msra.mxu0 0.0
  %125 = vmatprep.subr.mxu0 0.0
  %126 = vmatpush2.msra.mxu0 0.0
  %127 = vmatprep.subr.mxu0 0.0
  %128 = vmatpush2.msra.mxu0 0.0
  %129 = vmatprep.subr.mxu0 0.0
  %130 = vmatpush2.msra.mxu0 0.0
  %131 = vmatprep.mubr.f32.mxu0 0.0
  %132 = vmatmul.mubr.f32.gmra.mxu0 %v40
  %v133 = vpop.f32.mrf.mxu0
  %v134 = vadd.f32 %v36, %v133
  %v135 = vpop.f32.mrf.mxu0
  %136 = vmatprep.mubr.f32.mxu0 0.0
  %137 = vmatmul.mubr.f32.gmra.mxu0 %v43
  %v138 = vpop.f32.mrf.mxu0
  %v139 = vadd.f32 %v36, %v138
  %v140 = vpop.f32.mrf.mxu0
  %141 = vmatprep.mubr.f32.mxu0 0.0
  %142 = vmatmul.mubr.f32.gmra.mxu0 %v46
  %v143 = vpop.f32.mrf.mxu0
  %v144 = vadd.f32 %v36, %v143
  %v145 = vpop.f32.mrf.mxu0
  %146 = vmatprep.mubr.f32.mxu0 0.0
  %147 = vmatmul.mubr.f32.gmra.mxu0 %v49
  %v148 = vpop.f32.mrf.mxu0
  %v149 = vadd.f32 %v36, %v148
  %v150 = vpop.f32.mrf.mxu0
  %151 = vmatprep.mubr.f32.mxu0 0.0
  %152 = vmatmul.mubr.f32.gmra.mxu0 %v52
  %v153 = vpop.f32.mrf.mxu0
  %v154 = vadd.f32 %v36, %v153
  %v155 = vpop.f32.mrf.mxu0
  %156 = vmatprep.mubr.f32.mxu0 0.0
  %157 = vmatmul.mubr.f32.gmra.mxu0 %v55
  %v158 = vpop.f32.mrf.mxu0
  %v159 = vadd.f32 %v36, %v158
  %v160 = vpop.f32.mrf.mxu0
  %161 = vmatprep.mubr.f32.mxu0 0.0
  %162 = vmatmul.mubr.f32.gmra.mxu0 %v58
  %v163 = vpop.f32.mrf.mxu0
  %v164 = vadd.f32 %v36, %v163
  %v165 = vpop.f32.mrf.mxu0
  %166 = vmatprep.mubr.f32.mxu0 0.0
  %167 = vmatmul.mubr.f32.gmra.mxu0 %v61
  %v168 = vpop.f32.mrf.mxu0
  %v169 = vadd.f32 %v36, %v168
  %v170 = vpop.f32.mrf.mxu0
  %171 = vdwg.mxu0
  %vm172 = vcmask 130048
  %173 = vst.msk [vmem:[%s3] sm:$0xff] %vm172, %v134
  %174 = vst.msk [vmem:[%s3 + $0x8] sm:$0xff] %vm172, %v139
  %175 = vst.msk [vmem:[%s3 + $0x10] sm:$0xff] %vm172, %v144
  %176 = vst.msk [vmem:[%s3 + $0x18] sm:$0xff] %vm172, %v149
  %177 = vst.msk [vmem:[%s3 + $0x20] sm:$0xff] %vm172, %v154
  %178 = vst.msk [vmem:[%s3 + $0x28] sm:$0xff] %vm172, %v159
  %179 = vst.msk [vmem:[%s3 + $0x30] sm:$0xff] %vm172, %v164
  %180 = vst.msk [vmem:[%s3 + $0x38] sm:$0xff] %vm172, %v169
  %v181 = vmul.f32 %v134, %v134
  %v182 = vmul.f32 %v139, %v139
  %v183 = vmul.f32 %v144, %v144
  %v184 = vmul.f32 %v149, %v149
  %v185 = vmul.f32 %v154, %v154
  %v186 = vmul.f32 %v159, %v159
  %v187 = vmul.f32 %v164, %v164
  %v188 = vmul.f32 %v169, %v169
  %v189 = vsel %vm172, %v181, 0.0
  %v190 = vsel %vm172, %v182, 0.0
  %v191 = vadd.f32 %v189, %v190
  %v192 = vsel %vm172, %v183, 0.0
  %v193 = vadd.f32 %v191, %v192
  %v194 = vsel %vm172, %v184, 0.0
  %v195 = vadd.f32 %v193, %v194
  %v196 = vsel %vm172, %v185, 0.0
  %v197 = vadd.f32 %v195, %v196
  %v198 = vsel %vm172, %v186, 0.0
  %v199 = vadd.f32 %v197, %v198
  %v200 = vsel %vm172, %v187, 0.0
  %v201 = vadd.f32 %v199, %v200
  %v202 = vsel %vm172, %v188, 0.0
  %v203 = vadd.f32 %v201, %v202
  %v204 = vrot.slane %v203, 4
  %v205 = vadd.f32 %v203, %v204
  %v206 = vrot.slane %v205, 2
  %v207 = vadd.f32 %v205, %v206
  %v208 = vrot.slane %v207, 1
  %v209 = vadd.f32 %v207, %v208
  %v210 = vmax.f32 %v209, 1e-24
  %v211 = vrsqrt.pop %v210
  %v212 = vmul.f32 %v134, %v211
  %v213 = vmul.f32 %v139, %v211
  %v214 = vmul.f32 %v144, %v211
  %v215 = vmul.f32 %v149, %v211
  %v216 = vmul.f32 %v154, %v211
  %v217 = vmul.f32 %v159, %v211
  %v218 = vmul.f32 %v164, %v211
  %v219 = vmul.f32 %v169, %v211
  %v220 = vpack.c.bf16 %v213, %v212
  %v221 = vpack.c.bf16 %v215, %v214
  %v222 = vpack.c.bf16 %v217, %v216
  %v223 = vpack.c.bf16 %v219, %v218
  %v228 = vunpack.c.l.b16 %v220
  %v229 = vunpack.c.h.b16 %v220
  %v230 = vunpack.c.l.b16 %v221
  %v231 = vunpack.c.h.b16 %v221
  %v232 = vunpack.c.l.b16 %v222
  %v233 = vunpack.c.h.b16 %v222
  %v234 = vunpack.c.l.b16 %v223
  %v235 = vunpack.c.h.b16 %v223
  %v236 = vpack.c.b16 %v228, %v228
  %v237 = vpack.c.b16 %v229, %v229
  %v238 = vpack.c.b16 %v230, %v230
  %v239 = vpack.c.b16 %v231, %v231
  %v240 = vpack.c.b16 %v232, %v232
  %v241 = vpack.c.b16 %v233, %v233
  %v242 = vpack.c.b16 %v234, %v234
  %v243 = vpack.c.b16 %v235, %v235
  %vm252 = vcmask 125952
  %253 = vst.msk [vmem:[%s4] sm:$0xf] %vm252, %v236
  %254 = vst.msk [vmem:[%s4 + $0x4] sm:$0xf] %vm252, %v237
  %255 = vst.msk [vmem:[%s4 + $0x8] sm:$0xf] %vm252, %v238
  %256 = vst.msk [vmem:[%s4 + $0xc] sm:$0xf] %vm252, %v239
  %257 = vst.msk [vmem:[%s4 + $0x10] sm:$0xf] %vm252, %v240
  %258 = vst.msk [vmem:[%s4 + $0x14] sm:$0xf] %vm252, %v241
  %259 = vst.msk [vmem:[%s4 + $0x18] sm:$0xf] %vm252, %v242
  %260 = vst.msk [vmem:[%s4 + $0x1c] sm:$0xf] %vm252, %v243
  // Predicated region
  $region14: #{tpu_custom_call.1} parent=0 // pred_check
    _
  $region15: #{tpu_custom_call.1} parent=0 // pred_check_branch
    %262 = sbr.rel (0) target = $region17
  $region16: #{tpu_custom_call.1} parent=0 // pred_region
    _
  $region17: #{tpu_custom_call.1} parent=0 // pred_fallthru
    _
  // Predicated region
  $region18: #{tpu_custom_call.1} parent=0 // pred_check
    _
  $region19: #{tpu_custom_call.1} parent=0 // pred_check_branch
    %264 = sbr.rel (0) target = $region21
  $region20: #{tpu_custom_call.1} parent=0 // pred_region
    _
  $region21: #{tpu_custom_call.1} parent=0 // pred_fallthru
    _
  // Predicated region
  $region22: #{tpu_custom_call.1} parent=0 // pred_check
    _
  $region23: #{tpu_custom_call.1} parent=0 // pred_check_branch
    %266 = sbr.rel (0) target = $region25
  $region24: #{tpu_custom_call.1} parent=0 // pred_region
    _
  $region25: #{tpu_custom_call.1} parent=0 // pred_fallthru
    _
  // Predicated region
  $region26: #{tpu_custom_call.1} parent=0 // pred_check
    _
  $region27: #{tpu_custom_call.1} parent=0 // pred_check_branch
    %268 = sbr.rel (0) target = $region29
  $region28: #{tpu_custom_call.1} parent=0 // pred_region
    _
  $region29: #{tpu_custom_call.1} parent=0 // pred_fallthru
    _

</llo_original>
